<compile_context>
chip_gen: v5e
topology: v5e:2x2
jax: 0.10.0
libtpu: 0.0.40
codegen_flags: <defaults>
</compile_context>

<pallas_src>
import functools

import numpy as np
import jax
import jax.numpy as jnp
from jax.experimental import pallas as pl
from jax.experimental.pallas import tpu as pltpu

_LANE = 128


def _round_up(n: int, m: int) -> int:
    return pl.cdiv(n, m) * m


def bessel_kernel(x_ref, w_ref, o_ref, *, prefactor: float):
    # x_ref: VMEM (1, tile_e)          -- edge distances, E on the lane axis
    # w_ref: VMEM (num_basis, 1)       -- bessel frequencies, on sublanes
    # o_ref: VMEM (num_basis, tile_e)  -- lane-dense output tile
    x = x_ref[...]                                                 # (1, tile_e)
    w = w_ref[...]                                                 # (num_basis, 1)
    # Exact reciprocal on the narrow row once (num_basis x less EUP work than
    # dividing the full tile); prefactor folded in at trace time.
    inv = jnp.float32(prefactor) * pl.reciprocal(x, approx=False)  # (1, tile_e)
    o_ref[...] = jnp.sin(w * x) * inv                              # (num_basis, tile_e)


def bessel_basis(x, bessel_weights, r_max, *, tile_e: int = 8192):
    """Pallas BesselBasis forward.

    x: [E, 1] (or [E]) float32 distances (> 0).
    bessel_weights: [num_basis] float32.
    Returns [E, num_basis] float32 (same as the PyTorch forward for x [E, 1]).
    """
    x_flat = jnp.asarray(x, jnp.float32).reshape(-1)               # [E]
    w = jnp.asarray(bessel_weights, jnp.float32)
    E = x_flat.shape[0]
    num_basis = w.shape[0]
    prefactor = float(np.sqrt(2.0 / float(r_max)))                 # static, trace-time

    # Tile sizing: as few, as large tiles as possible (cap tile_e), each a
    # multiple of 128 lanes, with minimal padding waste for ragged E.
    n_tiles = max(1, pl.cdiv(E, tile_e))
    tile = _round_up(pl.cdiv(E, n_tiles), _LANE)
    e_pad = n_tiles * tile

    # Pad with 1.0 (not 0) so padded lanes stay finite; they are sliced off.
    x_row = jnp.pad(x_flat, (0, e_pad - E), constant_values=1.0).reshape(1, e_pad)
    w_col = w.reshape(num_basis, 1)

    out_t = pl.pallas_call(
        functools.partial(bessel_kernel, prefactor=prefactor),
        out_shape=jax.ShapeDtypeStruct((num_basis, e_pad), jnp.float32),
        grid=(n_tiles,),
        in_specs=[
            pl.BlockSpec((1, tile), lambda i: (0, i)),             # x row tile
            pl.BlockSpec((num_basis, 1), lambda i: (0, 0)),        # weights (resident)
        ],
        out_specs=pl.BlockSpec((num_basis, tile), lambda i: (0, i)),
        compiler_params=pltpu.CompilerParams(
            dimension_semantics=("parallel",)),                    # v7x megacore sharding
    )(x_row, w_col)

    # TODO(synk): if this feeds a consumer kernel (e.g. the radial MLP /
    # embedding matmul), fuse there instead of materializing [E, num_basis].
    return out_t[:, :E].T                                          # [E, num_basis]


if __name__ == "__main__":
    # Deterministic parameter initialization (mirrors BesselBasis.__init__).
    r_max = 5.0
    num_basis = 8
    bessel_weights = (np.pi / r_max) * jnp.linspace(
        1.0, float(num_basis), num_basis, dtype=jnp.float32)
    prefactor = float(np.sqrt(2.0 / r_max))

    key = jax.random.PRNGKey(0)
    # Small aligned case (single block) + ragged case (E not a multiple of 128).
    for E in (64, 1000):
        kx, key = jax.random.split(key)
        x = jax.random.uniform(kx, (E, 1), dtype=jnp.float32,
                               minval=0.1, maxval=r_max)
        out = jax.block_until_ready(bessel_basis(x, bessel_weights, r_max))

        # Reference in plain JAX (same math as the PyTorch forward).
        ref = prefactor * (jnp.sin(bessel_weights[None, :] * x) / x)
        assert out.shape == (E, num_basis)
        np.testing.assert_allclose(np.asarray(out), np.asarray(ref),
                                   rtol=1e-5, atol=1e-6)

    print("KERNEL_OK")
</pallas_src>

<mosaic_0001>
module attributes {stable_mosaic.version = 11 : i64} {
  func.func @bessel_kernel(%arg0: i32, %arg1: memref<1x128xf32, #tpu.memory_space<vmem>>, %arg2: memref<8x1xf32, #tpu.memory_space<vmem>>, %arg3: memref<8x128xf32, #tpu.memory_space<vmem>>) attributes {dimension_semantics = [#tpu.dimension_semantics<parallel>], iteration_bounds = array<i64: 1>, scalar_prefetch = 0 : i64, scratch_operands = 0 : i64, tpu.core_type = #tpu.core_type<tc>, window_params = [{transform_indices = @transform_0, window_bounds = array<i64: 1, 128>}, {pipeline_mode = #tpu.pipeline_mode<synchronous>, transform_indices = @transform_1, window_bounds = array<i64: 8, 1>}, {transform_indices = @transform_2, window_bounds = array<i64: 8, 128>}]} {
    %c0 = arith.constant 0 : index
    %c0_0 = arith.constant 0 : index
    %0 = vector.load %arg1[%c0, %c0_0] : memref<1x128xf32, #tpu.memory_space<vmem>>, vector<1x128xf32>
    %c0_1 = arith.constant 0 : index
    %c0_2 = arith.constant 0 : index
    %1 = vector.load %arg2[%c0_1, %c0_2] : memref<8x1xf32, #tpu.memory_space<vmem>>, vector<8x1xf32>
    %2 = tpu.reciprocal %0 : vector<1x128xf32> -> vector<1x128xf32>
    %cst = arith.constant 0.632455527 : f32
    %3 = vector.broadcast %cst : f32 to vector<1x128xf32>
    %4 = arith.mulf %3, %2 : vector<1x128xf32>
    %5 = vector.broadcast %1 : vector<8x1xf32> to vector<8x128xf32>
    %6 = vector.broadcast %0 : vector<1x128xf32> to vector<8x128xf32>
    %7 = arith.mulf %5, %6 : vector<8x128xf32>
    %8 = math.sin %7 : vector<8x128xf32>
    %9 = vector.broadcast %4 : vector<1x128xf32> to vector<8x128xf32>
    %10 = arith.mulf %8, %9 : vector<8x128xf32>
    %c0_3 = arith.constant 0 : index
    %c0_4 = arith.constant 0 : index
    %11 = vector.load %arg3[%c0_3, %c0_4] : memref<8x128xf32, #tpu.memory_space<vmem>>, vector<8x128xf32>
    tpu.vector_store %arg3[%c0_3, %c0_4], %10 {strides = array<i32>} : memref<8x128xf32, #tpu.memory_space<vmem>>, vector<8x128xf32>,
    return
  }
  func.func @transform_0(%arg0: i32) -> (i32, i32) {
    %c0_i32 = arith.constant 0 : i32
    %c0_i32_0 = arith.constant 0 : i32
    return %c0_i32, %arg0 : i32, i32
  }
  func.func @transform_1(%arg0: i32) -> (i32, i32) {
    %c0_i32 = arith.constant 0 : i32
    %c0_i32_0 = arith.constant 0 : i32
    %c0_i32_1 = arith.constant 0 : i32
    return %c0_i32, %c0_i32_0 : i32, i32
  }
  func.func @transform_2(%arg0: i32) -> (i32, i32) {
    %c0_i32 = arith.constant 0 : i32
    %c0_i32_0 = arith.constant 0 : i32
    return %c0_i32, %arg0 : i32, i32
  }
}

</mosaic_0001>

<llo_original>
// kernel: tpu_custom_call.1
$region0: #{tpu_custom_call.1}
  #allocation0 [shape = 'u32[]', space=smem, size = 0x4, offset = 0x4, fixed_abs, tag = 'smem constant byte address 0x4 - core index']
  #allocation1 [shape = 'u32[72,128]{1,0:T(1,128)}', space=vmem, size = 0x9000, scoped, tag = 'internal scratch']
  %s0 = inlined_call_operand.vmem [shape: f32[1,128], index: 0, kind: input, shape index: {}]
  %s1 = inlined_call_operand.vmem [shape: f32[8,1], index: 1, kind: input, shape index: {}]
  %s2 = inlined_call_operand.hbm [shape: f32[8,128], index: 2, kind: output, shape index: {}]
  %s3 = sld [smem:[#allocation0]]
  $region18: #{tpu_custom_call.1} parent=0
    _
  %s5 = ssub.s32 1, %s3
  %s6 = scalar_select 0, %s5, %s3
  $region1: #{tpu_custom_call.1} parent=0
    #allocation2 [shape = 'u8[4096]{0}', space=vmem, size = 0x1000, scoped, tag = 'output window, operand 0, single buffered']
    #allocation3 [shape = 's32[1]{0}', space=sflag, size = 0x4, scoped, tag = 'scoped memory for tpu_custom_call.1']
    %7 = vsyncpa [#allocation3], 0
    // Predicated region
    $region2: #{tpu_custom_call.1} parent=1 // pred_check
      _
    $region3: #{tpu_custom_call.1} parent=1 // pred_check_branch
      %9 = sbr.rel (0) target = $region5
    $region4: #{tpu_custom_call.1} parent=1 // pred_region
      _
    $region5: #{tpu_custom_call.1} parent=1 // pred_fallthru
      _
    // Predicated region
    $region6: #{tpu_custom_call.1} parent=1 // pred_check
      _
    $region7: #{tpu_custom_call.1} parent=1 // pred_check_branch
      %11 = sbr.rel (0) target = $region9
    $region8: #{tpu_custom_call.1} parent=1 // pred_region
      _
    $region9: #{tpu_custom_call.1} parent=1 // pred_fallthru
      _
    %v12 = vld [vmem:[%s0] sm:$0x1]
    %v13 = vld [vmem:[%s1] sm:$0xff]
    %v14 = vrcp.pop %v12
    %v15 = vmul.f32 %v12, %v14
    %v16 = vsub.f32 1.0, %v15
    %v17 = vmul.f32 %v14, %v16
    %v18 = vadd.f32 %v14, %v17
    %vm19 = vweird.f32 %v12
    %vm20 = vweird.f32 %v14
    %vm21 = vmor %vm19, %vm20
    %v22 = vsel %vm21, %v14, %v18
    %v23 = vand.u32 2147483647, %v12
    %vm24 = vcmp.eq.f32.partialorder %v23, 8.507059e+37
    %v25 = vand.u32 %v12, 2147483648
    %v26 = vor.u32 1.1754944e-38, %v25
    %v27 = vsel %vm24, %v26, %v22
    %v28 = vmul.f32 %v27, 0.6324555
    %30 = vset.pattern.permute.xlu0 0
    %31 = vperm.xlu0 %30, %v13
    %v32 = vpop.permute.xlu0 %31
    %v35 = vperm.slane %v12, 0
    %v37 = vmul.f32 %v32, %v35
    %v38 = vand.u32 2147483647, %v37
    %vm39 = vcmp.le.f32.partialorder %v38, 0.7853982
    %vm40 = vcmp.lt.s32.totalorder %v37, 0
    %v41 = vand.u32 %v37, 2139095040
    %v42 = vshrl.u32 %v41, 23
    %v43 = vsub.s32 %v42, 127
    %v44 = vand.u32 2147483647, %v37
    %v45 = vand.u32 %v44, 8388607
    %v46 = vor.u32 %v45, 8388608
    %v47 = vsub.s32 0, %v46
    %v48 = vadd.s32 %v43, 1
    %vm49 = vcmp.gt.s32.totalorder %v48, 0
    %v50 = vsel %vm49, %v48, 0
    %v51 = vshrl.u32 %v50, 5
    %v52 = vand.u32 %v50, 31
    %v53 = vsub.s32 32, %v52
    %v54 = vshrl.u32 683565275, %v53
    %v55 = vshll.u32 683565275, %v52
    %v56 = vshrl.u32 2475754826, %v53
    %v57 = vor.u32 %v55, %v56
    %v58 = vshll.u32 2475754826, %v52
    %v59 = vshrl.u32 2131351028, %v53
    %v60 = vor.u32 %v58, %v59
    %v61 = vshll.u32 2131351028, %v52
    %v62 = vshrl.u32 2102212464, %v53
    %v63 = vor.u32 %v61, %v62
    %v64 = vshll.u32 2102212464, %v52
    %v65 = vshrl.u32 920167782, %v53
    %v66 = vor.u32 %v64, %v65
    %v67 = vshll.u32 920167782, %v52
    %v68 = vshrl.u32 1326507024, %v53
    %v69 = vor.u32 %v67, %v68
    %vm70 = vcmp.lt.s32.totalorder %v51, 1
    %vm71 = vcmp.lt.s32.totalorder %v51, 2
    %vm72 = vcmp.lt.s32.totalorder %v51, 3
    %vm73 = vcmp.lt.s32.totalorder %v51, 4
    %v74 = vsel %vm70, %v54, %v57
    %v75 = vsel %vm73, %v63, 2102212464
    %v76 = vsel %vm72, %v60, %v75
    %v77 = vsel %vm71, %v74, %v76
    %v78 = vsel %vm70, %v57, %v60
    %v79 = vsel %vm73, %v66, 920167782
    %v80 = vsel %vm72, %v63, %v79
    %v81 = vsel %vm71, %v78, %v80
    %v82 = vsel %vm70, %v60, %v63
    %v83 = vsel %vm73, %v69, 1326507024
    %v84 = vsel %vm72, %v66, %v83
    %v85 = vsel %vm71, %v82, %v84
    %v86 = vshll.u32 %v46, 8
    %v87 = vand.u32 %v86, 65535
    %v88 = vshrl.u32 %v86, 16
    %v89 = vand.u32 %v85, 65535
    %v90 = vshrl.u32 %v85, 16
    %v91 = vmul.u32 %v87, %v89
    %v92 = vmul.u32 %v87, %v90
    %v93 = vmul.u32 %v88, %v89
    %v94 = vmul.u32 %v88, %v90
    %v95 = vshll.u32 %v92, 16
    %v96 = vshrl.u32 %v92, 16
    %v97 = vshll.u32 %v93, 16
    %v98 = vshrl.u32 %v93, 16
    %vm99 = vc.u32 %v91, %v95
    %v100 = vsel %vm99, 1, 0
    %v101 = vadd.s32 %v91, %v95
    %v102 = vadd.s32 %v94, %v100
    %vm103 = vc.u32 %v101, %v97
    %v104 = vsel %vm103, 1, 0
    %v105 = vadd.s32 %v101, %v97
    %v106 = vadd.s32 %v102, %v104
    %v107 = vadd.s32 %v106, %v96
    %v108 = vadd.s32 %v107, %v98
    %v109 = vand.u32 %v86, 65535
    %v110 = vshrl.u32 %v86, 16
    %v111 = vand.u32 %v81, 65535
    %v112 = vshrl.u32 %v81, 16
    %v113 = vmul.u32 %v109, %v111
    %v114 = vmul.u32 %v109, %v112
    %v115 = vmul.u32 %v110, %v111
    %v116 = vmul.u32 %v110, %v112
    %v117 = vshll.u32 %v114, 16
    %v118 = vshrl.u32 %v114, 16
    %v119 = vshll.u32 %v115, 16
    %v120 = vshrl.u32 %v115, 16
    %vm121 = vc.u32 %v113, %v117
    %v122 = vsel %vm121, 1, 0
    %v123 = vadd.s32 %v113, %v117
    %v124 = vadd.s32 %v116, %v122
    %vm125 = vc.u32 %v123, %v119
    %v126 = vsel %vm125, 1, 0
    %v127 = vadd.s32 %v123, %v119
    %v128 = vadd.s32 %v124, %v126
    %v129 = vadd.s32 %v128, %v118
    %v130 = vadd.s32 %v129, %v120
    %v131 = vmul.u32 %v86, %v77
    %v132 = vadd.s32 %v108, %v127
    %vm133 = vc.u32 %v108, %v127
    %v134 = vadd.s32 %v130, 1
    %v135 = vsel %vm133, %v134, %v130
    %v136 = vadd.s32 %v131, %v135
    %v137 = vadd.s32 %v136, 536870912
    %v138 = vshrl.u32 %v137, 30
    %v139 = vshll.u32 %v138, 30
    %v140 = vsub.s32 %v136, %v139
    %vm141 = vcmp.lt.s32.totalorder %v140, 0
    %v142 = vsub.s32 0, %v140
    %v143 = vsel %vm141, %v142, %v140
    %v144 = vclz %v143
    %v145 = vsub.s32 %v144, 2
    %vm146 = vcmp.gt.s32.totalorder 0, %v145
    %v147 = vsel %vm146, 0, %v145
    %v148 = vsub.s32 32, %v147
    %v149 = vshll.u32 %v140, %v147
    %v150 = vshrl.u32 %v132, %v148
    %v151 = vor.u32 %v149, %v150
    %v152 = vsub.s32 4294967266, %v147
    %v153 = vadd.s32 %v152, 127
    %v154 = vshll.u32 %v153, 23
    %v155 = vor.u32 4788187, %v154
    %v156 = vand.u32 2147483647, %v155
    %v158 = vcvt.s32.f32 %v151
    %v159 = vmul.f32 %v158, %v156
    %v160 = vxor.u32 %v159, 2147483648
    %v161 = vsel %vm40, %v160, %v159
    %v162 = vsub.s32 4, %v138
    %v163 = vsel %vm40, %v162, %v138
    %v164 = vsel %vm39, %v37, %v161
    %v165 = vsel %vm39, 0, %v163
    %v166 = vmul.f32 %v164, %v164
    %v167 = vmul.f32 %v166, -0.001358992
    %v168 = vadd.f32 %v167, 0.041655596
    %v169 = vmul.f32 %v166, %v168
    %v170 = vadd.f32 %v169, -0.4999988
    %v171 = vmul.f32 %v166, %v170
    %v172 = vadd.f32 1.0, %v171
    %v173 = vmul.f32 %v164, %v164
    %v174 = vmul.f32 %v173, -0.00019511016
    %v175 = vadd.f32 %v174, 0.008332121
    %v176 = vmul.f32 %v173, %v175
    %v177 = vadd.f32 %v176, -0.16666654
    %v178 = vmul.f32 %v173, %v177
    %v179 = vadd.f32 %v178, 1.0
    %v180 = vmul.f32 %v179, %v164
    %vm181 = vweird.f32 %v37
    %v182 = vadd.s32 %v165, 3
    %v183 = vand.u32 %v182, 3
    %vm184 = vcmp.lt.s32.totalorder %v183, 2
    %vm185 = vcmp.eq.s32.totalorder %v183, 0
    %v186 = vxor.u32 %v180, 2147483648
    %v187 = vsel %vm185, %v172, %v186
    %vm188 = vcmp.eq.s32.totalorder %v183, 2
    %v189 = vxor.u32 %v172, 2147483648
    %v190 = vsel %vm188, %v189, %v180
    %v191 = vsel %vm184, %v187, %v190
    %v192 = vsel %vm181, nan, %v191
    %v194 = vperm.slane %v28, 0
    %v196 = vmul.f32 %v192, %v194
    %197 = vst [vmem:[#allocation2] sm:$0xff] %v196
    // Predicated region
    $region10: #{tpu_custom_call.1} parent=1 // pred_check
      _
    $region11: #{tpu_custom_call.1} parent=1 // pred_check_branch
      %199 = sbr.rel (0) target = $region13
    $region12: #{tpu_custom_call.1} parent=1 // pred_region
      %201 = vsyncadd [#allocation3], 0
      %s203 = sshll.u32 [#allocation2], 4
      %s204 = int_to_ptr.vmem [resolvable:$true] %s203
      %s205 = sshll.u32 %s2, 4
      %s206 = int_to_ptr.hbm [resolvable:$true] %s205
      %208 = dma.vmem_to_hbm [thread:$0]  %s204, 128, %s206, [#allocation3]
    $region13: #{tpu_custom_call.1} parent=1 // pred_fallthru
      _
    // Predicated region
    $region14: #{tpu_custom_call.1} parent=1 // pred_check
      _
    $region15: #{tpu_custom_call.1} parent=1 // pred_check_branch
      %210 = sbr.rel (0) target = $region17
    $region16: #{tpu_custom_call.1} parent=1 // pred_region
      %212 = dma.done [#allocation3], 128
    $region17: #{tpu_custom_call.1} parent=1 // pred_fallthru
      _
    %213 = vsyncpa [#allocation3], 1

</llo_original>
